<compile_context>
chip_gen: v7x
topology: tpu7x:2x2x1
jax: 0.10.0
libtpu: 0.0.40
codegen_flags: <defaults>
</compile_context>

<pallas_src>
import math

import jax
import jax.numpy as jnp
from jax.experimental import pallas as pl
from jax.experimental.pallas import tpu as pltpu

_LANE = 128  # vreg lane width


def dummy_norm_kernel(w_ref, x_ref, o_ref):
    # w_ref:         (1, block_d)  -- broadcast over the row tile
    # x_ref:         (block_m, block_d) in the input dtype
    # o_ref:         (block_m, block_d) in the promoted output dtype
    o_ref[...] = x_ref[...].astype(o_ref.dtype) * w_ref[...]


def _round_down(x, m):
    return max(m, (x // m) * m)


def _round_up(x, m):
    return ((x + m - 1) // m) * m


def dummy_norm(x, weight, *, target_tile_bytes=4 * 1024 * 1024):
    """y = weight * x, broadcasting weight over the last axis of x."""
    orig_shape = x.shape
    dim = orig_shape[-1]
    total = math.prod(orig_shape)
    out_dtype = jnp.result_type(x.dtype, weight.dtype)  # PyTorch-style promotion
    w = weight.astype(out_dtype)

    if total == 0:
        return x.astype(out_dtype) * w

    itemsize_x = jnp.dtype(x.dtype).itemsize
    itemsize_o = jnp.dtype(out_dtype).itemsize
    itemsize = max(itemsize_x, itemsize_o)
    # dtype-aware sublane packing: 8 rows f32, 16 bf16/f16, 32 int8/fp8
    pack = max(8, 32 // min(itemsize_x, itemsize_o))

    # ---- lane-dense layout: (rows, W) with W = lcm(dim, 128) when exact ----
    lane_w = (dim * _LANE) // math.gcd(dim, _LANE)
    if total % lane_w == 0:
        dim_p = lane_w
        rows = total // dim_p
        reps = dim_p // dim
        x2 = x.reshape(rows, dim_p)
        w2 = (jnp.tile(w, reps) if reps > 1 else w).reshape(1, dim_p)
    else:
        # Fall back to the natural (rows, dim) layout; boundary lanes use
        # masked stores, but no extra pad/copy HBM passes are introduced.
        dim_p = dim
        rows = total // dim
        x2 = x.reshape(rows, dim_p)
        w2 = w.reshape(1, dim_p)

    # ---- feature blocking: full width unless one minimum-row slab overflows
    target_elems = max(1, target_tile_bytes // itemsize)
    if dim_p % _LANE == 0 and dim_p * pack > target_elems:
        block_d = max(_LANE, _round_down(target_elems // pack, _LANE))
    else:
        block_d = dim_p
    grid_d = pl.cdiv(dim_p, block_d)

    # ---- row blocking: big tiles, but keep >= 4 grid steps for non-tiny
    #      inputs so both v7x TensorCores participate and the pipeline overlaps
    _MIN_GRID_M = 4
    if rows <= pack:
        block_m = rows  # equals full dim -> legal even if not a multiple of pack
    else:
        budget_m = _round_down(target_elems // block_d, pack)
        cap_m = _round_up(pl.cdiv(rows, _MIN_GRID_M), pack)
        block_m = max(pack, min(budget_m, cap_m))
        if block_m >= rows:
            block_m = rows
    grid_m = pl.cdiv(rows, block_m)

    # Double-buffered footprint: 2 x (x tile + out tile) + weight row.
    tile_bytes = block_m * block_d * (itemsize_x + itemsize_o) + block_d * itemsize_o
    vmem_limit = int(min(48 * 2**20, max(32 * 2**20, 2.5 * tile_bytes)))

    out2 = pl.pallas_call(
        dummy_norm_kernel,
        out_shape=jax.ShapeDtypeStruct((rows, dim_p), out_dtype),
        # feature axis outermost: weight block index is constant on the inner
        # (row) axis, so the weight is not re-DMA'd every step when grid_d > 1.
        grid=(grid_d, grid_m),
        in_specs=[
            pl.BlockSpec((1, block_d), lambda j, i: (0, j)),         # weight row
            pl.BlockSpec((block_m, block_d), lambda j, i: (i, j)),   # x tile
        ],
        out_specs=pl.BlockSpec((block_m, block_d), lambda j, i: (i, j)),
        compiler_params=pltpu.CompilerParams(
            dimension_semantics=("parallel", "parallel"),
            vmem_limit_bytes=vmem_limit,
        ),
    )(w2, x2)

    return out2.reshape(orig_shape)


# TODO(synk): ddrop_forward (training-time Bernoulli channel dropout via
# get_probs/argsort/bernoulli) is not part of the standard forward pass and is
# omitted.

if __name__ == "__main__":
    key = jax.random.PRNGKey(0)
    k_w, k_x, k_w2, k_x2, k_w3, k_x3, k_w4, k_x4 = jax.random.split(key, 8)

    # 1) Module-like shapes: batch=2, seq=8, hidden=32.  Lane-dense repack
    #    path (lcm(32,128)=128, 512 elements -> (4, 128)).
    batch, seq, dim = 2, 8, 32
    weight = jax.random.normal(k_w, (dim,), dtype=jnp.float32)
    x = jax.random.normal(k_x, (batch, seq, dim), dtype=jnp.float32)
    y = jax.block_until_ready(dummy_norm(x, weight))
    assert y.shape == x.shape and y.dtype == x.dtype
    assert jnp.allclose(y, weight * x, atol=1e-6, rtol=1e-6)

    # 2) dim multiple of 128 with a ragged row count (exercises the cdiv grid
    #    / masked boundary row block) using a tiny tile budget.
    b2, s2, d2 = 4, 25, 256
    weight2 = jax.random.normal(k_w2, (d2,), dtype=jnp.float32)
    x2 = jax.random.normal(k_x2, (b2, s2, d2), dtype=jnp.float32)
    y2 = jax.block_until_ready(dummy_norm(x2, weight2, target_tile_bytes=8 * 1024))
    assert y2.shape == x2.shape
    assert jnp.allclose(y2, weight2 * x2, atol=1e-6, rtol=1e-6)

    # 3) Awkward width (dim=96 -> lcm=384) with mixed dtypes: bf16 x, f32
    #    weight -> f32 output (PyTorch-style promotion).
    b3, s3, d3 = 2, 6, 96
    weight3 = jax.random.normal(k_w3, (d3,), dtype=jnp.float32)
    x3 = jax.random.normal(k_x3, (b3, s3, d3), dtype=jnp.bfloat16)
    y3 = jax.block_until_ready(dummy_norm(x3, weight3))
    assert y3.shape == x3.shape and y3.dtype == jnp.float32
    assert jnp.allclose(y3, weight3 * x3, atol=1e-2, rtol=1e-2)

    # 4) Fallback masked-store path (length not a multiple of lcm(dim, 128)).
    b4, s4, d4 = 1, 5, 48
    weight4 = jax.random.normal(k_w4, (d4,), dtype=jnp.float32)
    x4 = jax.random.normal(k_x4, (b4, s4, d4), dtype=jnp.float32)
    y4 = jax.block_until_ready(dummy_norm(x4, weight4))
    assert y4.shape == x4.shape
    assert jnp.allclose(y4, weight4 * x4, atol=1e-6, rtol=1e-6)

    print("KERNEL_OK")
</pallas_src>

<mosaic_0001>
module attributes {stable_mosaic.version = 11 : i64} {
  func.func @dummy_norm_kernel(%arg0: i32, %arg1: i32, %arg2: memref<1x128xf32, #tpu.memory_space<vmem>>, %arg3: memref<4x128xf32, #tpu.memory_space<vmem>>, %arg4: memref<4x128xf32, #tpu.memory_space<vmem>>) attributes {dimension_semantics = [#tpu.dimension_semantics<parallel>, #tpu.dimension_semantics<parallel>], iteration_bounds = array<i64: 1, 1>, scalar_prefetch = 0 : i64, scratch_operands = 0 : i64, tpu.core_type = #tpu.core_type<tc>, window_params = [{transform_indices = @transform_0, window_bounds = array<i64: 1, 128>}, {transform_indices = @transform_1, window_bounds = array<i64: 4, 128>}, {transform_indices = @transform_2, window_bounds = array<i64: 4, 128>}]} {
    %c0 = arith.constant 0 : index
    %c0_0 = arith.constant 0 : index
    %0 = vector.load %arg3[%c0, %c0_0] : memref<4x128xf32, #tpu.memory_space<vmem>>, vector<4x128xf32>
    %c0_1 = arith.constant 0 : index
    %c0_2 = arith.constant 0 : index
    %1 = vector.load %arg2[%c0_1, %c0_2] : memref<1x128xf32, #tpu.memory_space<vmem>>, vector<1x128xf32>
    %2 = vector.broadcast %1 : vector<1x128xf32> to vector<4x128xf32>
    %3 = arith.mulf %0, %2 : vector<4x128xf32>
    %c0_3 = arith.constant 0 : index
    %c0_4 = arith.constant 0 : index
    %4 = vector.load %arg4[%c0_3, %c0_4] : memref<4x128xf32, #tpu.memory_space<vmem>>, vector<4x128xf32>
    tpu.vector_store %arg4[%c0_3, %c0_4], %3 {strides = array<i32>} : memref<4x128xf32, #tpu.memory_space<vmem>>, vector<4x128xf32>,
    return
  }
  func.func @transform_0(%arg0: i32, %arg1: i32) -> (i32, i32) {
    %c0_i32 = arith.constant 0 : i32
    %c0_i32_0 = arith.constant 0 : i32
    return %c0_i32, %arg0 : i32, i32
  }
  func.func @transform_1(%arg0: i32, %arg1: i32) -> (i32, i32) {
    %c0_i32 = arith.constant 0 : i32
    return %arg1, %arg0 : i32, i32
  }
  func.func @transform_2(%arg0: i32, %arg1: i32) -> (i32, i32) {
    %c0_i32 = arith.constant 0 : i32
    return %arg1, %arg0 : i32, i32
  }
}

</mosaic_0001>

<llo_original>
// kernel: tpu_custom_call.1
$region0: #{tpu_custom_call.1}
  #allocation0 [shape = 'u32[]', space=smem, size = 0x4, offset = 0x4, fixed_abs, tag = 'smem constant byte address 0x4 - core index']
  #allocation1 [shape = 'u32[144,128]{1,0:T(1,128)}', space=vmem, size = 0x12000, scoped, tag = 'internal scratch']
  %s0 = inlined_call_operand.hbm [shape: f32[1,128], index: 0, kind: input, shape index: {}]
  %s1 = inlined_call_operand.hbm [shape: f32[4,128], index: 1, kind: input, shape index: {}]
  %s2 = inlined_call_operand.hbm [shape: f32[4,128], index: 2, kind: output, shape index: {}]
  %s3 = sld [smem:[#allocation0]]
  $region26: #{tpu_custom_call.1} parent=0
    _
  %s5 = ssub.s32 1, %s3
  %s6 = scalar_select 0, %s5, %s3
  $region1: #{tpu_custom_call.1} parent=0
    #allocation2 [shape = 'u8[512]{0}', space=vmem, size = 0x400, scoped, tag = 'input window, operand 0, single buffered']
    #allocation3 [shape = 's32[1]{0}', space=sflag, size = 0x4, scoped, tag = 'scoped memory for tpu_custom_call.1']
    #allocation4 [shape = 's32[1]{0}', space=sflag, size = 0x4, scoped, tag = 'scoped memory for tpu_custom_call.1']
    #allocation5 [shape = 'u8[2048]{0}', space=vmem, size = 0x800, scoped, tag = 'input window, operand 1, single buffered']
    #allocation6 [shape = 's32[1]{0}', space=sflag, size = 0x4, scoped, tag = 'scoped memory for tpu_custom_call.1']
    #allocation7 [shape = 'u8[2048]{0}', space=vmem, size = 0x800, scoped, tag = 'output window, operand 0, single buffered']
    %7 = vsyncpa [#allocation3], 0
    %8 = vsyncpa [#allocation6], 0
    %9 = vsyncpa [#allocation4], 0
    // Predicated region
    $region2: #{tpu_custom_call.1} parent=1 // pred_check
      _
    $region3: #{tpu_custom_call.1} parent=1 // pred_check_branch
      %11 = sbr.rel (0) target = $region5
    $region4: #{tpu_custom_call.1} parent=1 // pred_region
      %s13 = ssub.s32 16, 16
      %14 = vsyncadd [#allocation3], %s13
      %s16 = sshll.u32 [#allocation2], 4
      %s17 = int_to_ptr.vmem [resolvable:$true] %s16
      %19 = dma.hbm_to_vmem [thread:$0]  %s0, 16, %s17, [#allocation3]
    $region5: #{tpu_custom_call.1} parent=1 // pred_fallthru
      _
    // Predicated region
    $region6: #{tpu_custom_call.1} parent=1 // pred_check
      _
    $region7: #{tpu_custom_call.1} parent=1 // pred_check_branch
      %21 = sbr.rel (0) target = $region9
    $region8: #{tpu_custom_call.1} parent=1 // pred_region
      %s23 = ssub.s32 64, 64
      %24 = vsyncadd [#allocation6], %s23
      %s26 = sshll.u32 [#allocation5], 4
      %s27 = int_to_ptr.vmem [resolvable:$true] %s26
      %29 = dma.hbm_to_vmem [thread:$0]  %s1, 64, %s27, [#allocation6]
    $region9: #{tpu_custom_call.1} parent=1 // pred_fallthru
      _
    // Predicated region
    $region10: #{tpu_custom_call.1} parent=1 // pred_check
      _
    $region11: #{tpu_custom_call.1} parent=1 // pred_check_branch
      %31 = sbr.rel (0) target = $region13
    $region12: #{tpu_custom_call.1} parent=1 // pred_region
      %32 = dma.done [#allocation3], 16
    $region13: #{tpu_custom_call.1} parent=1 // pred_fallthru
      _
    // Predicated region
    $region14: #{tpu_custom_call.1} parent=1 // pred_check
      _
    $region15: #{tpu_custom_call.1} parent=1 // pred_check_branch
      %34 = sbr.rel (0) target = $region17
    $region16: #{tpu_custom_call.1} parent=1 // pred_region
      %35 = dma.done [#allocation6], 64
    $region17: #{tpu_custom_call.1} parent=1 // pred_fallthru
      _
    %v36 = vld [vmem:[#allocation5] sm:$0xf]
    %v37 = vld [vmem:[#allocation2] sm:$0x1]
    %v39 = vlaneseq
    %v40 = vshrl.u32 %v39, 7
    %v41 = vsub.s32 0, %v40
    %v42 = vrot.slane %v37, %v41
    %v44 = vmul.f32 %v36, %v42
    %45 = vst [vmem:[#allocation7] sm:$0xf] %v44
    // Predicated region
    $region18: #{tpu_custom_call.1} parent=1 // pred_check
      _
    $region19: #{tpu_custom_call.1} parent=1 // pred_check_branch
      %47 = sbr.rel (0) target = $region21
    $region20: #{tpu_custom_call.1} parent=1 // pred_region
      %s49 = ssub.s32 64, 64
      %50 = vsyncadd [#allocation4], %s49
      %s52 = sshll.u32 [#allocation7], 4
      %s53 = int_to_ptr.vmem [resolvable:$true] %s52
      %55 = dma.vmem_to_hbm [thread:$0]  %s53, 64, %s2, [#allocation4]
    $region21: #{tpu_custom_call.1} parent=1 // pred_fallthru
      _
    // Predicated region
    $region22: #{tpu_custom_call.1} parent=1 // pred_check
      _
    $region23: #{tpu_custom_call.1} parent=1 // pred_check_branch
      %57 = sbr.rel (0) target = $region25
    $region24: #{tpu_custom_call.1} parent=1 // pred_region
      %58 = dma.done [#allocation4], 64
    $region25: #{tpu_custom_call.1} parent=1 // pred_fallthru
      _
    %59 = vsyncpa [#allocation3], 1
    %60 = vsyncpa [#allocation6], 1
    %61 = vsyncpa [#allocation4], 1

</llo_original>
